<compile_context>
chip_gen: v6e
topology: v6e:2x2x1
jax: 0.10.0
libtpu: 0.0.40
codegen_flags: <defaults>
</compile_context>

<pallas_src>
import functools
import math

import jax
import jax.numpy as jnp
from jax.experimental import pallas as pl
from jax.experimental.pallas import tpu as pltpu

BN_EPS = 1e-5
# BN(affine=False, running_mean=0, running_var=1) == multiply by 1/sqrt(1+eps), add 0.
BN_SCALE = 1.0 / math.sqrt(1.0 + BN_EPS)


# ---------------------------------------------------------------------------
# Small helpers
# ---------------------------------------------------------------------------

def _round_up(x, m):
    return (x + m - 1) // m * m


def _pick_tile(dim, align, max_tile):
    """Return (tile, padded_dim): tile is a multiple of `align`, <= max_tile, divides padded_dim."""
    d = _round_up(dim, align)
    if d <= max_tile:
        return d, d
    t = max_tile
    while t >= align:
        if d % t == 0:
            return t, d
        t -= align
    return max_tile, _round_up(d, max_tile)


def _vmem_limit(nbytes):
    # explicit scoped-VMEM budget with headroom; capped so it is safe on every generation
    return int(min(max(2 * nbytes, 8 << 20), 32 << 20))


# ---------------------------------------------------------------------------
# Pallas kernels
# ---------------------------------------------------------------------------

def _mm_kernel(x_ref, w_ref, o_ref, acc_ref):
    @pl.when(pl.program_id(2) == 0)
    def _():
        acc_ref[...] = jnp.zeros_like(acc_ref)

    acc_ref[...] += jnp.dot(x_ref[...], w_ref[...], preferred_element_type=jnp.float32)

    @pl.when(pl.program_id(2) == pl.num_programs(2) - 1)
    def _():
        o_ref[...] = acc_ref[...]


def _mm_kernel_relu(x_ref, w_ref, o_ref, acc_ref):
    @pl.when(pl.program_id(2) == 0)
    def _():
        acc_ref[...] = jnp.zeros_like(acc_ref)

    acc_ref[...] += jnp.dot(x_ref[...], w_ref[...], preferred_element_type=jnp.float32)

    @pl.when(pl.program_id(2) == pl.num_programs(2) - 1)
    def _():
        o_ref[...] = jnp.maximum(acc_ref[...], 0.0)


@functools.partial(jax.jit, static_argnames=("relu",))
def matmul_fused(x, w, relu):
    """(M,K) @ (K,N) [+ ReLU], bf16 MXU inputs, f32 accumulate, tiled over (M, N, K)."""
    M, K = x.shape
    K2, N = w.shape
    assert K == K2
    tm, Mp = _pick_tile(M, 16, 256)     # 16-aligned for bf16 sublane packing; 256 fits all chips
    tn, Np = _pick_tile(N, 128, 512)    # lane-dense output tiles
    tk, Kp = _pick_tile(K, 128, 1024)

    xb = jnp.pad(x.astype(jnp.bfloat16), ((0, Mp - M), (0, Kp - K)))
    wb = jnp.pad(w.astype(jnp.bfloat16), ((0, Kp - K), (0, Np - N)))

    kernel = _mm_kernel_relu if relu else _mm_kernel
    # double-buffered bf16 inputs + double-buffered f32 output + f32 accumulator
    vmem_bytes = 2 * (tm * tk * 2 + tk * tn * 2 + tm * tn * 4) + tm * tn * 4

    out = pl.pallas_call(
        kernel,
        out_shape=jax.ShapeDtypeStruct((Mp, Np), jnp.float32),
        grid=(Mp // tm, Np // tn, Kp // tk),
        in_specs=[
            pl.BlockSpec((tm, tk), lambda i, j, k: (i, k)),
            pl.BlockSpec((tk, tn), lambda i, j, k: (k, j)),
        ],
        out_specs=pl.BlockSpec((tm, tn), lambda i, j, k: (i, j)),
        scratch_shapes=[pltpu.VMEM((tm, tn), jnp.float32)],
        compiler_params=pltpu.CompilerParams(
            dimension_semantics=("parallel", "parallel", "arbitrary"),
            vmem_limit_bytes=_vmem_limit(vmem_bytes),
        ),
    )(xb, wb)
    return out[:M, :N]


def _dw_kernel(p_ref, w_ref, o_ref):
    taps = p_ref.shape[0]
    acc = p_ref[0] * w_ref[0]
    for t in range(1, taps):
        acc = acc + p_ref[t] * w_ref[t]
    o_ref[...] = acc


@jax.jit
def depthwise_fused(patches, w):
    """patches: (k*k, M, C) shifted input taps; w: (k*k, 1, C). f32 VPU MACs, tiled over M."""
    taps, M, C = patches.shape
    # Keep the double-buffered (taps, tm, C) f32 input under ~6 MiB.
    budget = 6 << 20
    tm_max = max(8, (budget // (taps * C * 4 * 2)) // 8 * 8)
    tm = min(512, tm_max, _round_up(M, 8))
    Mp = _round_up(M, tm)
    p = jnp.pad(patches, ((0, 0), (0, Mp - M), (0, 0)))

    vmem_bytes = 2 * (taps * tm * C * 4 + tm * C * 4 + taps * C * 4)
    out = pl.pallas_call(
        _dw_kernel,
        out_shape=jax.ShapeDtypeStruct((Mp, C), jnp.float32),
        grid=(Mp // tm,),
        in_specs=[
            pl.BlockSpec((taps, tm, C), lambda i: (0, i, 0)),
            pl.BlockSpec((taps, 1, C), lambda i: (0, 0, 0)),
        ],
        out_specs=pl.BlockSpec((tm, C), lambda i: (i, 0)),
        compiler_params=pltpu.CompilerParams(
            dimension_semantics=("parallel",),
            vmem_limit_bytes=_vmem_limit(vmem_bytes),
        ),
    )(p, w)
    return out[:M]


def _avgpool_kernel(x_ref, o_ref):
    o_ref[...] = jnp.mean(x_ref[...], axis=1)


@jax.jit
def global_avgpool(x):
    """x: (N,H,W,C) -> (N,C) mean over spatial (matches AvgPool2d(feature_map_size))."""
    N, H, W, C = x.shape
    x3 = x.reshape(N, H * W, C)
    return pl.pallas_call(
        _avgpool_kernel,
        out_shape=jax.ShapeDtypeStruct((N, C), jnp.float32),
        grid=(1,),
        in_specs=[pl.BlockSpec((N, H * W, C), lambda i: (0, 0, 0))],
        out_specs=pl.BlockSpec((N, C), lambda i: (0, 0)),
        compiler_params=pltpu.CompilerParams(dimension_semantics=("arbitrary",)),
    )(x3)


# ---------------------------------------------------------------------------
# Glue: patch extraction, conv wrappers (all MACs happen inside Pallas)
# ---------------------------------------------------------------------------

def _extract_patches(x, k, stride):
    """x: (N,H,W,C), pad=k//2.  Returns list over (kh,kw) of (N*Ho*Wo, C) and (N,Ho,Wo)."""
    N, H, W, C = x.shape
    pad = k // 2
    Ho = (H + 2 * pad - k) // stride + 1
    Wo = (W + 2 * pad - k) // stride + 1
    xp = jnp.pad(x, ((0, 0), (pad, pad), (pad, pad), (0, 0)))
    cols = []
    for kh in range(k):
        for kw in range(k):
            sl = xp[:, kh:kh + stride * (Ho - 1) + 1:stride,
                       kw:kw + stride * (Wo - 1) + 1:stride, :]
            cols.append(sl.reshape(N * Ho * Wo, C))
    return cols, (N, Ho, Wo)


def conv2d(x, w_oihw, stride, relu):
    """Dense conv (groups=1), weight (O,I,k,k), pad=k//2, via im2col + tiled Pallas matmul."""
    O, I, k, _ = w_oihw.shape
    cols, (N, Ho, Wo) = _extract_patches(x, k, stride)
    xm = jnp.concatenate(cols, axis=1)                       # (M, k*k*I), order (kh,kw,cin)
    wm = jnp.transpose(w_oihw, (2, 3, 1, 0)).reshape(k * k * I, O)
    y = matmul_fused(xm, wm, relu=relu)
    return y.reshape(N, Ho, Wo, O)


def dwconv2d(x, w_dw, stride):
    """Depthwise conv, weight (C,1,k,k), pad=k//2, via stacked taps + tiled Pallas MAC kernel."""
    C, _, k, _ = w_dw.shape
    cols, (N, Ho, Wo) = _extract_patches(x, k, stride)
    patches = jnp.stack(cols, axis=0)                        # (k*k, M, C)
    wk = jnp.transpose(w_dw, (2, 3, 1, 0)).reshape(k * k, 1, C)
    y = depthwise_fused(patches, wk)
    return y.reshape(N, Ho, Wo, C)


def pwconv2d(x, w_pw, relu):
    """1x1 conv, weight (O,I,1,1), via tiled Pallas matmul."""
    N, H, W, C = x.shape
    O = w_pw.shape[0]
    wm = w_pw.reshape(O, C).T
    y = matmul_fused(x.reshape(-1, C), wm, relu=relu)
    return y.reshape(N, H, W, O)


# ---------------------------------------------------------------------------
# Parameter construction (deterministic, mirrors _initialize_weights; BN folded in)
# ---------------------------------------------------------------------------

CHOICE_CFG = {  # index -> (ksize, conv-sequence)  mirroring block_keys
    0: (3, "pdp"),       # shufflenet_3x3
    1: (5, "pdp"),       # shufflenet_5x5
    2: (7, "pdp"),       # shufflenet_7x7
    3: (3, "dpdpdp"),    # xception_3x3
}


def init_block_params(key, inp, oup, mid, ksize, stride, sequence):
    """Mirrors ShuffleNetBlock._decode_point_depth_conv + branch_proj; BN scale folded in."""
    channels = inp // 2 if stride == 1 else inp
    oup_main = oup - channels
    assert oup_main > 0
    layers = []
    first_depth = first_point = True
    pc = c = channels
    keys = iter(jax.random.split(key, 2 * len(sequence) + 4))
    for i, token in enumerate(sequence):
        if i + 1 == len(sequence):
            assert token == "p", "Last conv must be point-wise conv."
            c = oup_main
        elif token == "p" and first_point:
            c = mid
        if token == "d":
            assert pc == c
            s = stride if first_depth else 1
            # depthwise conv: weight.shape[1] == 1 -> std = 1.0 ; fold BN scale
            w = jax.random.normal(next(keys), (c, 1, ksize, ksize), jnp.float32) * BN_SCALE
            layers.append(("d", w, s))
            first_depth = False
        elif token == "p":
            # pointwise conv: std = 1.0 / in_channels ; fold BN scale
            w = jax.random.normal(next(keys), (c, pc, 1, 1), jnp.float32) * (1.0 / pc) * BN_SCALE
            layers.append(("p", w))
            first_point = False
        pc = c
    params = {"main": layers, "stride": stride}
    if stride == 2:
        k1, k2 = jax.random.split(next(keys))
        dw_w = jax.random.normal(k1, (channels, 1, ksize, ksize), jnp.float32) * BN_SCALE
        pw_w = (jax.random.normal(k2, (channels, channels, 1, 1), jnp.float32)
                * (1.0 / channels) * BN_SCALE)
        params["proj"] = (dw_w, pw_w)
    return params


def init_model_params(key, first_conv_channels, last_conv_channels, n_classes, choices):
    stage_blocks = [4, 4, 8, 4]
    stage_channels = [64, 160, 320, 640]
    ki = iter(jax.random.split(key, 4 + sum(stage_blocks)))
    params = {}
    # first conv: 'first' in name -> std 0.01 ; BN scale folded in
    params["first_conv_w"] = jax.random.normal(
        next(ki), (first_conv_channels, 3, 3, 3), jnp.float32) * 0.01 * BN_SCALE
    blocks = []
    p_channels = first_conv_channels
    bidx = 0
    for num_blocks, channels in zip(stage_blocks, stage_channels):
        for i in range(num_blocks):
            stride = 2 if i == 0 else 1
            inp = p_channels if i == 0 else channels
            mid = channels // 2
            ksize, seq = CHOICE_CFG[choices[bidx]]
            blocks.append(init_block_params(next(ki), inp, channels, mid, ksize, stride, seq))
            bidx += 1
        p_channels = channels
    params["blocks"] = blocks
    params["conv_last_w"] = jax.random.normal(
        next(ki), (last_conv_channels, p_channels, 1, 1), jnp.float32) * (1.0 / p_channels) * BN_SCALE
    # Linear: std 0.01, no bias
    params["classifier_w"] = jax.random.normal(
        next(ki), (n_classes, last_conv_channels), jnp.float32) * 0.01
    return params


# ---------------------------------------------------------------------------
# Forward pass
# ---------------------------------------------------------------------------

def block_forward(x, bp):
    stride = bp["stride"]
    if stride == 1:
        # torch _channel_shuffle returns (even channels, odd channels)
        x_proj = x[..., 0::2]
        h = x[..., 1::2]
    else:
        x_proj = x
        h = x
    for layer in bp["main"]:
        if layer[0] == "d":
            _, w, s = layer
            h = dwconv2d(h, w, s)                 # dw conv + (folded) BN, no ReLU
        else:
            _, w = layer
            h = pwconv2d(h, w, relu=True)         # pw conv + (folded) BN + ReLU
    if stride == 2:
        dw_w, pw_w = bp["proj"]
        z = dwconv2d(x_proj, dw_w, stride=2)
        x_proj = pwconv2d(z, pw_w, relu=True)
    return jnp.concatenate([x_proj, h], axis=-1)


def shufflenet_v2_oneshot_forward(x_nchw, params):
    bs = x_nchw.shape[0]
    x = jnp.transpose(x_nchw, (0, 2, 3, 1)).astype(jnp.float32)   # NCHW -> NHWC
    x = conv2d(x, params["first_conv_w"], stride=2, relu=True)    # first_conv + BN + ReLU
    for bp in params["blocks"]:
        x = block_forward(x, bp)
    x = pwconv2d(x, params["conv_last_w"], relu=True)             # conv_last + BN + ReLU
    x = global_avgpool(x)                                         # (bs, last_conv_channels)
    # nn.Dropout(0.1): identity in eval mode.
    x = x.reshape(bs, -1)
    logits = matmul_fused(x, params["classifier_w"].T, relu=False)
    return logits


# ---------------------------------------------------------------------------

if __name__ == "__main__":
    key = jax.random.PRNGKey(0)
    kx, kp = jax.random.split(key)

    # Small-but-valid config: input_size must be divisible by 32.
    input_size = 32
    first_conv_channels = 16
    last_conv_channels = 256
    n_classes = 64
    batch = 2

    n_blocks = sum([4, 4, 8, 4])
    # deterministic fixed architecture, cycling through all 4 candidate ops
    choices = [i % 4 for i in range(n_blocks)]

    x = jax.random.normal(kx, (batch, 3, input_size, input_size), jnp.float32)
    params = init_model_params(kp, first_conv_channels, last_conv_channels, n_classes, choices)

    out = shufflenet_v2_oneshot_forward(x, params)
    out = jax.block_until_ready(out)
    assert out.shape == (batch, n_classes), out.shape
    assert bool(jnp.all(jnp.isfinite(out)))
    print("KERNEL_OK")
</pallas_src>

<mosaic_0001>
module attributes {stable_mosaic.version = 11 : i64} {
  func.func @_mm_kernel_relu(%arg0: i32, %arg1: i32, %arg2: i32, %arg3: memref<256x128xbf16, #tpu.memory_space<vmem>>, %arg4: memref<128x128xbf16, #tpu.memory_space<vmem>>, %arg5: memref<256x128xf32, #tpu.memory_space<vmem>>, %arg6: memref<256x128xf32, #tpu.memory_space<vmem>>) attributes {dimension_semantics = [#tpu.dimension_semantics<parallel>, #tpu.dimension_semantics<parallel>, #tpu.dimension_semantics<arbitrary>], iteration_bounds = array<i64: 2, 1, 1>, scalar_prefetch = 0 : i64, scratch_operands = 1 : i64, tpu.core_type = #tpu.core_type<tc>, window_params = [{transform_indices = @transform_0, window_bounds = array<i64: 256, 128>}, {transform_indices = @transform_1, window_bounds = array<i64: 128, 128>}, {transform_indices = @transform_2, window_bounds = array<i64: 256, 128>}]} {
    %c0_i32 = arith.constant 0 : i32
    %0 = arith.cmpi eq, %arg2, %c0_i32 : i32
    %1 = arith.extui %0 : i1 to i32
    %c0_i32_0 = arith.constant 0 : i32
    %2 = arith.cmpi ne, %1, %c0_i32_0 : i32
    scf.if %2 {
      %cst_10 = arith.constant 0.000000e+00 : f32
      %12 = vector.broadcast %cst_10 : f32 to vector<256x128xf32>
      %c0_11 = arith.constant 0 : index
      %c0_12 = arith.constant 0 : index
      %13 = vector.load %arg6[%c0_11, %c0_12] : memref<256x128xf32, #tpu.memory_space<vmem>>, vector<256x128xf32>
      tpu.vector_store %arg6[%c0_11, %c0_12], %12 {strides = array<i32>} : memref<256x128xf32, #tpu.memory_space<vmem>>, vector<256x128xf32>,
    } else {
    }
    %c0 = arith.constant 0 : index
    %c0_1 = arith.constant 0 : index
    %3 = vector.load %arg6[%c0, %c0_1] : memref<256x128xf32, #tpu.memory_space<vmem>>, vector<256x128xf32>
    %c0_2 = arith.constant 0 : index
    %c0_3 = arith.constant 0 : index
    %4 = vector.load %arg3[%c0_2, %c0_3] : memref<256x128xbf16, #tpu.memory_space<vmem>>, vector<256x128xbf16>
    %c0_4 = arith.constant 0 : index
    %c0_5 = arith.constant 0 : index
    %5 = vector.load %arg4[%c0_4, %c0_5] : memref<128x128xbf16, #tpu.memory_space<vmem>>, vector<128x128xbf16>
    %cst = arith.constant dense<0.000000e+00> : vector<256x128xf32>
    %6 = tpu.matmul %4, %5, %cst {dimension_numbers = #tpu.dot_dimension_numbers<[1], [0], [0], [1], [0, 0, 1, 1], [], []>} : vector<256x128xbf16>, vector<128x128xbf16>, vector<256x128xf32> -> vector<256x128xf32>
    %7 = arith.addf %3, %6 : vector<256x128xf32>
    %c0_6 = arith.constant 0 : index
    %c0_7 = arith.constant 0 : index
    %8 = vector.load %arg6[%c0_6, %c0_7] : memref<256x128xf32, #tpu.memory_space<vmem>>, vector<256x128xf32>
    tpu.vector_store %arg6[%c0_6, %c0_7], %7 {strides = array<i32>} : memref<256x128xf32, #tpu.memory_space<vmem>>, vector<256x128xf32>,
    %c0_i32_8 = arith.constant 0 : i32
    %9 = arith.cmpi eq, %arg2, %c0_i32_8 : i32
    %10 = arith.extui %9 : i1 to i32
    %c0_i32_9 = arith.constant 0 : i32
    %11 = arith.cmpi ne, %10, %c0_i32_9 : i32
    scf.if %11 {
      %c0_10 = arith.constant 0 : index
      %c0_11 = arith.constant 0 : index
      %12 = vector.load %arg6[%c0_10, %c0_11] : memref<256x128xf32, #tpu.memory_space<vmem>>, vector<256x128xf32>
      %cst_12 = arith.constant 0.000000e+00 : f32
      %13 = vector.broadcast %cst_12 : f32 to vector<256x128xf32>
      %14 = arith.maximumf %12, %13 : vector<256x128xf32>
      %c0_13 = arith.constant 0 : index
      %c0_14 = arith.constant 0 : index
      %15 = vector.load %arg5[%c0_13, %c0_14] : memref<256x128xf32, #tpu.memory_space<vmem>>, vector<256x128xf32>
      tpu.vector_store %arg5[%c0_13, %c0_14], %14 {strides = array<i32>} : memref<256x128xf32, #tpu.memory_space<vmem>>, vector<256x128xf32>,
    } else {
    }
    return
  }
  func.func @transform_0(%arg0: i32, %arg1: i32, %arg2: i32) -> (i32, i32) {
    %c0_i32 = arith.constant 0 : i32
    return %arg0, %arg2 : i32, i32
  }
  func.func @transform_1(%arg0: i32, %arg1: i32, %arg2: i32) -> (i32, i32) {
    %c0_i32 = arith.constant 0 : i32
    return %arg2, %arg1 : i32, i32
  }
  func.func @transform_2(%arg0: i32, %arg1: i32, %arg2: i32) -> (i32, i32) {
    %c0_i32 = arith.constant 0 : i32
    return %arg0, %arg1 : i32, i32
  }
}

</mosaic_0001>

<llo_original>
// kernel: matmul_fused.1
$region0: #{matmul_fused.1}
  #allocation0 [shape = 'u32[]', space=smem, size = 0x4, offset = 0x4, fixed_abs, tag = 'smem constant byte address 0x4 - core index']
  #allocation1 [shape = 'u32[144,128]{1,0:T(1,128)}', space=vmem, size = 0x12000, scoped, tag = 'internal scratch']
  #allocation2 [shape = 'f32[256,128]{1,0:T(8,128)}', space=vmem, size = 0x20000, scoped, tag = 'scratch operand']
  %s0 = inlined_call_operand.vmem [shape: bf16[512,128], index: 0, kind: input, shape index: {}]
  %s1 = inlined_call_operand.vmem [shape: bf16[128,128], index: 1, kind: input, shape index: {}]
  %s2 = inlined_call_operand.vmem [shape: f32[512,128], index: 2, kind: output, shape index: {}]
  %s3 = sld [smem:[#allocation0]]
  $region49: #{matmul_fused.1} parent=0
    _
  %s5 = ssub.s32 1, %s3
  %s6 = scalar_select 0, %s5, %s3
  loop: start=0, step=1, limit=4
  $region2: #{matmul_fused.1} parent=0 // loop_pre_header
    _
  $region3: #{matmul_fused.1} parent=0 // loop_header
    %s8 = sphi 0, %s12
    %p9 = scmp.ge.s32.totalorder %s8, 4
    %s15 = sphi 0, %s34
    %s16 = sphi 0, %s30
    %s17 = sphi 0, %s26
    %s18 = sphi 0, %s15
    %s19 = sphi 0, %s16
    %s20 = sphi 0, %s17
    %s21 = sphi 0, %s18
    %s22 = sphi 0, %s19
    %s23 = sphi 0, %s20
    %s39 = sphi 0, %s41
    %s42 = sphi 0, %s39
    %s43 = sphi 0, %s42
    %s59 = sphi 0, %s43
    %s67 = sphi 0, %s69
    %s70 = sphi 0, %s67
    %s71 = sphi 0, %s70
    %s87 = sphi 0, %s71
    %s95 = sphi 0, %s97
    %s98 = sphi 0, %s95
    %s99 = sphi 0, %s98
    %s115 = sphi 0, %s99
  $region4: #{matmul_fused.1} parent=0 // loop_header_branch
    %11 = sbr.rel (%p9) target = $region8
  $region5: #{matmul_fused.1} parent=0 // loop_body
    %s13 = ssub.s32 %s8, 1
    %s14 = ssub.s32 %s8, 2
    %s24 = sadd.s32 1, %s17
    %p25 = scmp.ge.s32.totalorder %s24, 1
    %s26 = scalar_select %p25, 0, %s24
    %s27 = sadd.s32 1, %s16
    %s28 = scalar_select %p25, %s27, %s16
    %p29 = scmp.ge.s32.totalorder %s28, 1
    %s30 = scalar_select %p29, 0, %s28
    %s31 = sadd.s32 1, %s15
    %s32 = scalar_select %p29, %s31, %s15
    %p33 = scmp.ge.s32.totalorder %s32, 2
    %s34 = scalar_select %p33, 0, %s32
    %s35 = ssub.s32 %s15, %s34
    %s36 = ssub.s32 %s17, %s26
    %s37 = sor.u32 %s35, %s36
    %p38 = scmp.eq.s32.totalorder %s37, 0
    %s40 = sadd.s32 %s39, 1
    %s41 = scalar_select %p38, %s39, %s40
    %p44 = pneg %p38
    %p45 = scmp.eq.s32.totalorder %s8, 1
    %p46 = por %p44, %p45
    %p47 = scmp.ne.s32.totalorder %s39, %s42
    %p48 = scmp.eq.s32.totalorder %s8, 0
    %p49 = por %p47, %p48
    %p50 = scmp.ne.s32.totalorder %s39, %s42
    %p51 = scmp.eq.s32.totalorder %s13, 1
    %p52 = por %p50, %p51
    %p53 = scmp.ne.s32.totalorder %s42, %s43
    %p54 = scmp.eq.s32.totalorder %s13, 0
    %p55 = por %p53, %p54
    %p56 = scmp.ne.s32.totalorder %s42, %s43
    %p57 = scmp.eq.s32.totalorder %s14, 1
    %p58 = por %p56, %p57
    %p60 = scmp.ne.s32.totalorder %s43, %s59
    %p61 = scmp.eq.s32.totalorder %s14, 0
    %p62 = por %p60, %p61
    %s63 = ssub.s32 %s17, %s26
    %s64 = ssub.s32 %s16, %s30
    %s65 = sor.u32 %s63, %s64
    %p66 = scmp.eq.s32.totalorder %s65, 0
    %s68 = sadd.s32 %s67, 1
    %s69 = scalar_select %p66, %s67, %s68
    %p72 = pneg %p66
    %p73 = scmp.eq.s32.totalorder %s8, 1
    %p74 = por %p72, %p73
    %p75 = scmp.ne.s32.totalorder %s67, %s70
    %p76 = scmp.eq.s32.totalorder %s8, 0
    %p77 = por %p75, %p76
    %p78 = scmp.ne.s32.totalorder %s67, %s70
    %p79 = scmp.eq.s32.totalorder %s13, 1
    %p80 = por %p78, %p79
    %p81 = scmp.ne.s32.totalorder %s70, %s71
    %p82 = scmp.eq.s32.totalorder %s13, 0
    %p83 = por %p81, %p82
    %p84 = scmp.ne.s32.totalorder %s70, %s71
    %p85 = scmp.eq.s32.totalorder %s14, 1
    %p86 = por %p84, %p85
    %p88 = scmp.ne.s32.totalorder %s71, %s87
    %p89 = scmp.eq.s32.totalorder %s14, 0
    %p90 = por %p88, %p89
    %s91 = ssub.s32 %s15, %s34
    %s92 = ssub.s32 %s16, %s30
    %s93 = sor.u32 %s91, %s92
    %p94 = scmp.eq.s32.totalorder %s93, 0
    %s96 = sadd.s32 %s95, 1
    %s97 = scalar_select %p94, %s95, %s96
    %p100 = pneg %p94
    %p101 = scmp.eq.s32.totalorder %s8, 1
    %p102 = por %p100, %p101
    %p103 = scmp.ne.s32.totalorder %s95, %s98
    %p104 = scmp.eq.s32.totalorder %s8, 0
    %p105 = por %p103, %p104
    %p106 = scmp.ne.s32.totalorder %s95, %s98
    %p107 = scmp.eq.s32.totalorder %s13, 1
    %p108 = por %p106, %p107
    %p109 = scmp.ne.s32.totalorder %s98, %s99
    %p110 = scmp.eq.s32.totalorder %s13, 0
    %p111 = por %p109, %p110
    %p112 = scmp.ne.s32.totalorder %s98, %s99
    %p113 = scmp.eq.s32.totalorder %s14, 1
    %p114 = por %p112, %p113
    %p116 = scmp.ne.s32.totalorder %s99, %s115
    %p117 = scmp.eq.s32.totalorder %s14, 0
    %p118 = por %p116, %p117
    %p119 = scmp.le.s32.totalorder 1, %s8
    %p120 = scmp.lt.s32.totalorder %s8, 3
    %p121 = pnand %p119, %p120
    %p122 = pneg %p121
    // Predicated region
    $region9: #{matmul_fused.1} parent=5 // pred_check
      _
    $region10: #{matmul_fused.1} parent=5 // pred_check_branch
      %124 = sbr.rel (%p121) target = $region12
    $region11: #{matmul_fused.1} parent=5 // pred_region
      %s125 = ssub.s32 %s8, 1
      // Predicated region
      $region13: #{matmul_fused.1} parent=11 // pred_check
        %p126 = pneg %p83
      $region14: #{matmul_fused.1} parent=11 // pred_check_branch
        %128 = sbr.rel (%p126) target = $region16
      $region15: #{matmul_fused.1} parent=11 // pred_region
        %s129 = smul.u32 16, %s20
        %p130 = scmp.lt.s32.totalorder %s129, 15
        %s131 = scalar_select %p130, %s129, 15
        %p132 = scmp.lt.s32.totalorder %s19, 0
        %s133 = scalar_select %p132, %s19, 0
        %s134 = sadd.s32 %s133, %s131
        %s135 = smul.addr %s134, 4
        %s136 = scalar_lea.vmem %s1, %s135
        %s137 = smul.u32 16, %s20
      $region16: #{matmul_fused.1} parent=11 // pred_fallthru
        _
    $region12: #{matmul_fused.1} parent=5 // pred_fallthru
      _
    %p138 = scmp.lt.s32.totalorder %s8, 2
    // Predicated region
    $region17: #{matmul_fused.1} parent=5 // pred_check
      %p139 = pneg %p138
    $region18: #{matmul_fused.1} parent=5 // pred_check_branch
      %141 = sbr.rel (%p139) target = $region20
    $region19: #{matmul_fused.1} parent=5 // pred_region
      // Predicated region
      $region21: #{matmul_fused.1} parent=19 // pred_check
        %p142 = pneg %p49
      $region22: #{matmul_fused.1} parent=19 // pred_check_branch
        %144 = sbr.rel (%p142) target = $region24
      $region23: #{matmul_fused.1} parent=19 // pred_region
        %s145 = smul.u32 32, %s15
        %p146 = scmp.lt.s32.totalorder %s145, 63
        %s147 = scalar_select %p146, %s145, 63
        %p148 = scmp.lt.s32.totalorder %s17, 0
        %s149 = scalar_select %p148, %s17, 0
        %s150 = sadd.s32 %s149, %s147
        %s151 = smul.addr %s150, 4
        %s152 = scalar_lea.vmem %s0, %s151
        %s153 = smul.u32 32, %s15
      $region24: #{matmul_fused.1} parent=19 // pred_fallthru
        _
    $region20: #{matmul_fused.1} parent=5 // pred_fallthru
      _
    %p154 = scmp.le.s32.totalorder 1, %s8
    %p155 = scmp.lt.s32.totalorder %s8, 3
    %p156 = pnand %p154, %p155
    %p157 = pneg %p156
    // Predicated region
    $region25: #{matmul_fused.1} parent=5 // pred_check
      _
    $region26: #{matmul_fused.1} parent=5 // pred_check_branch
      %159 = sbr.rel (%p156) target = $region28
    $region27: #{matmul_fused.1} parent=5 // pred_region
      %s160 = ssub.s32 %s8, 1
      %s161 = smul.u32 32, %s18
      %p162 = scmp.lt.s32.totalorder %s161, 63
      %s163 = scalar_select %p162, %s161, 63
      %p164 = scmp.lt.s32.totalorder %s20, 0
      %s165 = scalar_select %p164, %s20, 0
      %s166 = sadd.s32 %s165, %s163
      %s167 = smul.addr %s166, 4
      %s168 = scalar_lea.vmem %s0, %s167
      %p169 = pneg %p55
      %p170 = pneg %p52
      %s171 = smul.u32 16, %s20
      %p172 = scmp.lt.s32.totalorder %s171, 15
      %s173 = scalar_select %p172, %s171, 15
      %p174 = scmp.lt.s32.totalorder %s19, 0
      %s175 = scalar_select %p174, %s19, 0
      %s176 = sadd.s32 %s175, %s173
      %s177 = smul.addr %s176, 4
      %s178 = scalar_lea.vmem %s1, %s177
      %p179 = pneg %p83
      %p180 = pneg %p80
      %p181 = pneg %p111
      %p182 = pneg %p108
      %s183 = smul.u32 32, %s18
      %p184 = scmp.lt.s32.totalorder %s183, 63
      %s185 = scalar_select %p184, %s183, 63
      %p186 = scmp.lt.s32.totalorder %s19, 0
      %s187 = scalar_select %p186, %s19, 0
      %s188 = sadd.s32 %s187, %s185
      %s189 = smul.addr %s188, 8
      %s190 = scalar_lea.vmem %s2, %s189
      %s191 = smul.u32 32, %s18
      %p192 = scmp.lt.s32.totalorder %s191, 63
      %s193 = scalar_select %p192, %s191, 63
      %p194 = scmp.lt.s32.totalorder %s20, 0
      %s195 = scalar_select %p194, %s20, 0
      %s196 = sadd.s32 %s195, %s193
      %s197 = smul.addr %s196, 4
      %s198 = scalar_lea.vmem %s0, %s197
      %s199 = smul.u32 32, %s18
      %s200 = smul.u32 16, %s20
      %p201 = scmp.lt.s32.totalorder %s200, 15
      %s202 = scalar_select %p201, %s200, 15
      %p203 = scmp.lt.s32.totalorder %s19, 0
      %s204 = scalar_select %p203, %s19, 0
      %s205 = sadd.s32 %s204, %s202
      %s206 = smul.addr %s205, 4
      %s207 = scalar_lea.vmem %s1, %s206
      %s208 = smul.u32 16, %s20
      %s209 = smul.u32 32, %s18
      %p210 = scmp.lt.s32.totalorder %s209, 63
      %s211 = scalar_select %p210, %s209, 63
      %p212 = scmp.lt.s32.totalorder %s19, 0
      %s213 = scalar_select %p212, %s19, 0
      %s214 = sadd.s32 %s213, %s211
      %s215 = smul.addr %s214, 8
      %s216 = scalar_lea.vmem %s2, %s215
      %s217 = smul.u32 32, %s18
      %p219 = scmp.eq.s32.totalorder %s20, 0
      // Predicated region
      $region29: #{matmul_fused.1} parent=27 // pred_check
        %p220 = pneg %p219
      $region30: #{matmul_fused.1} parent=27 // pred_check_branch
        %222 = sbr.rel (%p220) target = $region32
      $region31: #{matmul_fused.1} parent=27 // pred_region
        %223 = vst [vmem:[#allocation2] sm:$0xff] 0.0
        %224 = vst [vmem:[#allocation2 + $0x8] sm:$0xff] 0.0
        %225 = vst [vmem:[#allocation2 + $0x10] sm:$0xff] 0.0
        %226 = vst [vmem:[#allocation2 + $0x18] sm:$0xff] 0.0
        %227 = vst [vmem:[#allocation2 + $0x20] sm:$0xff] 0.0
        %228 = vst [vmem:[#allocation2 + $0x28] sm:$0xff] 0.0
        %229 = vst [vmem:[#allocation2 + $0x30] sm:$0xff] 0.0
        %230 = vst [vmem:[#allocation2 + $0x38] sm:$0xff] 0.0
        %231 = vst [vmem:[#allocation2 + $0x40] sm:$0xff] 0.0
        %232 = vst [vmem:[#allocation2 + $0x48] sm:$0xff] 0.0
        %233 = vst [vmem:[#allocation2 + $0x50] sm:$0xff] 0.0
        %234 = vst [vmem:[#allocation2 + $0x58] sm:$0xff] 0.0
        %235 = vst [vmem:[#allocation2 + $0x60] sm:$0xff] 0.0
        %236 = vst [vmem:[#allocation2 + $0x68] sm:$0xff] 0.0
        %237 = vst [vmem:[#allocation2 + $0x70] sm:$0xff] 0.0
        %238 = vst [vmem:[#allocation2 + $0x78] sm:$0xff] 0.0
        %239 = vst [vmem:[#allocation2 + $0x80] sm:$0xff] 0.0
        %240 = vst [vmem:[#allocation2 + $0x88] sm:$0xff] 0.0
        %241 = vst [vmem:[#allocation2 + $0x90] sm:$0xff] 0.0
        %242 = vst [vmem:[#allocation2 + $0x98] sm:$0xff] 0.0
        %243 = vst [vmem:[#allocation2 + $0xa0] sm:$0xff] 0.0
        %244 = vst [vmem:[#allocation2 + $0xa8] sm:$0xff] 0.0
        %245 = vst [vmem:[#allocation2 + $0xb0] sm:$0xff] 0.0
        %246 = vst [vmem:[#allocation2 + $0xb8] sm:$0xff] 0.0
        %247 = vst [vmem:[#allocation2 + $0xc0] sm:$0xff] 0.0
        %248 = vst [vmem:[#allocation2 + $0xc8] sm:$0xff] 0.0
        %249 = vst [vmem:[#allocation2 + $0xd0] sm:$0xff] 0.0
        %250 = vst [vmem:[#allocation2 + $0xd8] sm:$0xff] 0.0
        %251 = vst [vmem:[#allocation2 + $0xe0] sm:$0xff] 0.0
        %252 = vst [vmem:[#allocation2 + $0xe8] sm:$0xff] 0.0
        %253 = vst [vmem:[#allocation2 + $0xf0] sm:$0xff] 0.0
        %254 = vst [vmem:[#allocation2 + $0xf8] sm:$0xff] 0.0
      $region32: #{matmul_fused.1} parent=27 // pred_fallthru
        _
      %v255 = vld [vmem:[#allocation2] sm:$0xff]
      %v256 = vld [vmem:[#allocation2 + $0x8] sm:$0xff]
      %v257 = vld [vmem:[#allocation2 + $0x10] sm:$0xff]
      %v258 = vld [vmem:[#allocation2 + $0x18] sm:$0xff]
      %v259 = vld [vmem:[#allocation2 + $0x20] sm:$0xff]
      %v260 = vld [vmem:[#allocation2 + $0x28] sm:$0xff]
      %v261 = vld [vmem:[#allocation2 + $0x30] sm:$0xff]
      %v262 = vld [vmem:[#allocation2 + $0x38] sm:$0xff]
      %v263 = vld [vmem:[#allocation2 + $0x40] sm:$0xff]
      %v264 = vld [vmem:[#allocation2 + $0x48] sm:$0xff]
      %v265 = vld [vmem:[#allocation2 + $0x50] sm:$0xff]
      %v266 = vld [vmem:[#allocation2 + $0x58] sm:$0xff]
      %v267 = vld [vmem:[#allocation2 + $0x60] sm:$0xff]
      %v268 = vld [vmem:[#allocation2 + $0x68] sm:$0xff]
      %v269 = vld [vmem:[#allocation2 + $0x70] sm:$0xff]
      %v270 = vld [vmem:[#allocation2 + $0x78] sm:$0xff]
      %v271 = vld [vmem:[#allocation2 + $0x80] sm:$0xff]
      %v272 = vld [vmem:[#allocation2 + $0x88] sm:$0xff]
      %v273 = vld [vmem:[#allocation2 + $0x90] sm:$0xff]
      %v274 = vld [vmem:[#allocation2 + $0x98] sm:$0xff]
      %v275 = vld [vmem:[#allocation2 + $0xa0] sm:$0xff]
      %v276 = vld [vmem:[#allocation2 + $0xa8] sm:$0xff]
      %v277 = vld [vmem:[#allocation2 + $0xb0] sm:$0xff]
      %v278 = vld [vmem:[#allocation2 + $0xb8] sm:$0xff]
      %v279 = vld [vmem:[#allocation2 + $0xc0] sm:$0xff]
      %v280 = vld [vmem:[#allocation2 + $0xc8] sm:$0xff]
      %v281 = vld [vmem:[#allocation2 + $0xd0] sm:$0xff]
      %v282 = vld [vmem:[#allocation2 + $0xd8] sm:$0xff]
      %v283 = vld [vmem:[#allocation2 + $0xe0] sm:$0xff]
      %v284 = vld [vmem:[#allocation2 + $0xe8] sm:$0xff]
      %v285 = vld [vmem:[#allocation2 + $0xf0] sm:$0xff]
      %v286 = vld [vmem:[#allocation2 + $0xf8] sm:$0xff]
      %v287 = vld [vmem:[%s198] sm:$0xf]
      %v288 = vld [vmem:[%s198 + $0x4] sm:$0xf]
      %v289 = vld [vmem:[%s198 + $0x8] sm:$0xf]
      %v290 = vld [vmem:[%s198 + $0xc] sm:$0xf]
      %v291 = vld [vmem:[%s198 + $0x10] sm:$0xf]
      %v292 = vld [vmem:[%s198 + $0x14] sm:$0xf]
      %v293 = vld [vmem:[%s198 + $0x18] sm:$0xf]
      %v294 = vld [vmem:[%s198 + $0x1c] sm:$0xf]
      %v295 = vld [vmem:[%s198 + $0x20] sm:$0xf]
      %v296 = vld [vmem:[%s198 + $0x24] sm:$0xf]
      %v297 = vld [vmem:[%s198 + $0x28] sm:$0xf]
      %v298 = vld [vmem:[%s198 + $0x2c] sm:$0xf]
      %v299 = vld [vmem:[%s198 + $0x30] sm:$0xf]
      %v300 = vld [vmem:[%s198 + $0x34] sm:$0xf]
      %v301 = vld [vmem:[%s198 + $0x38] sm:$0xf]
      %v302 = vld [vmem:[%s198 + $0x3c] sm:$0xf]
      %v303 = vld [vmem:[%s198 + $0x40] sm:$0xf]
      %v304 = vld [vmem:[%s198 + $0x44] sm:$0xf]
      %v305 = vld [vmem:[%s198 + $0x48] sm:$0xf]
      %v306 = vld [vmem:[%s198 + $0x4c] sm:$0xf]
      %v307 = vld [vmem:[%s198 + $0x50] sm:$0xf]
      %v308 = vld [vmem:[%s198 + $0x54] sm:$0xf]
      %v309 = vld [vmem:[%s198 + $0x58] sm:$0xf]
      %v310 = vld [vmem:[%s198 + $0x5c] sm:$0xf]
      %v311 = vld [vmem:[%s198 + $0x60] sm:$0xf]
      %v312 = vld [vmem:[%s198 + $0x64] sm:$0xf]
      %v313 = vld [vmem:[%s198 + $0x68] sm:$0xf]
      %v314 = vld [vmem:[%s198 + $0x6c] sm:$0xf]
      %v315 = vld [vmem:[%s198 + $0x70] sm:$0xf]
      %v316 = vld [vmem:[%s198 + $0x74] sm:$0xf]
      %v317 = vld [vmem:[%s198 + $0x78] sm:$0xf]
      %v318 = vld [vmem:[%s198 + $0x7c] sm:$0xf]
      %v319 = vld [vmem:[%s207] sm:$0xf]
      %v320 = vld [vmem:[%s207 + $0x4] sm:$0xf]
      %v321 = vld [vmem:[%s207 + $0x8] sm:$0xf]
      %v322 = vld [vmem:[%s207 + $0xc] sm:$0xf]
      %v323 = vld [vmem:[%s207 + $0x10] sm:$0xf]
      %v324 = vld [vmem:[%s207 + $0x14] sm:$0xf]
      %v325 = vld [vmem:[%s207 + $0x18] sm:$0xf]
      %v326 = vld [vmem:[%s207 + $0x1c] sm:$0xf]
      %v327 = vld [vmem:[%s207 + $0x20] sm:$0xf]
      %v328 = vld [vmem:[%s207 + $0x24] sm:$0xf]
      %v329 = vld [vmem:[%s207 + $0x28] sm:$0xf]
      %v330 = vld [vmem:[%s207 + $0x2c] sm:$0xf]
      %v331 = vld [vmem:[%s207 + $0x30] sm:$0xf]
      %v332 = vld [vmem:[%s207 + $0x34] sm:$0xf]
      %v333 = vld [vmem:[%s207 + $0x38] sm:$0xf]
      %v334 = vld [vmem:[%s207 + $0x3c] sm:$0xf]
      %v367 = vunpack.c.l.b16 %v287
      %v368 = vunpack.c.l.b16 %v288
      %v369 = vunpack.c.l.b16 %v289
      %v370 = vunpack.c.l.b16 %v290
      %v371 = vunpack.c.l.b16 %v291
      %v372 = vunpack.c.l.b16 %v292
      %v373 = vunpack.c.l.b16 %v293
      %v374 = vunpack.c.l.b16 %v294
      %v375 = vunpack.c.l.b16 %v295
      %v376 = vunpack.c.l.b16 %v296
      %v377 = vunpack.c.l.b16 %v297
      %v378 = vunpack.c.l.b16 %v298
      %v379 = vunpack.c.l.b16 %v299
      %v380 = vunpack.c.l.b16 %v300
      %v381 = vunpack.c.l.b16 %v301
      %v382 = vunpack.c.l.b16 %v302
      %v383 = vunpack.c.l.b16 %v303
      %v384 = vunpack.c.l.b16 %v304
      %v385 = vunpack.c.l.b16 %v305
      %v386 = vunpack.c.l.b16 %v306
      %v387 = vunpack.c.l.b16 %v307
      %v388 = vunpack.c.l.b16 %v308
      %v389 = vunpack.c.l.b16 %v309
      %v390 = vunpack.c.l.b16 %v310
      %v391 = vunpack.c.l.b16 %v311
      %v392 = vunpack.c.l.b16 %v312
      %v393 = vunpack.c.l.b16 %v313
      %v394 = vunpack.c.l.b16 %v314
      %v395 = vunpack.c.l.b16 %v315
      %v396 = vunpack.c.l.b16 %v316
      %v397 = vunpack.c.l.b16 %v317
      %v398 = vunpack.c.l.b16 %v318
      %v399 = vpack.c.b16 %v368, %v367
      %v400 = vpack.c.b16 %v370, %v369
      %v401 = vpack.c.b16 %v372, %v371
      %v402 = vpack.c.b16 %v374, %v373
      %v403 = vpack.c.b16 %v376, %v375
      %v404 = vpack.c.b16 %v378, %v377
      %v405 = vpack.c.b16 %v380, %v379
      %v406 = vpack.c.b16 %v382, %v381
      %v407 = vpack.c.b16 %v384, %v383
      %v408 = vpack.c.b16 %v386, %v385
      %v409 = vpack.c.b16 %v388, %v387
      %v410 = vpack.c.b16 %v390, %v389
      %v411 = vpack.c.b16 %v392, %v391
      %v412 = vpack.c.b16 %v394, %v393
      %v413 = vpack.c.b16 %v396, %v395
      %v414 = vpack.c.b16 %v398, %v397
      %v447 = vunpack.c.l.b16 %v319
      %v448 = vunpack.c.l.b16 %v320
      %v449 = vunpack.c.l.b16 %v321
      %v450 = vunpack.c.l.b16 %v322
      %v451 = vunpack.c.l.b16 %v323
      %v452 = vunpack.c.l.b16 %v324
      %v453 = vunpack.c.l.b16 %v325
      %v454 = vunpack.c.l.b16 %v326
      %v455 = vunpack.c.l.b16 %v327
      %v456 = vunpack.c.l.b16 %v328
      %v457 = vunpack.c.l.b16 %v329
      %v458 = vunpack.c.l.b16 %v330
      %v459 = vunpack.c.l.b16 %v331
      %v460 = vunpack.c.l.b16 %v332
      %v461 = vunpack.c.l.b16 %v333
      %v462 = vunpack.c.l.b16 %v334
      %v463 = vpack.c.b16 %v448, %v447
      %v464 = vpack.c.b16 %v450, %v449
      %v465 = vpack.c.b16 %v452, %v451
      %v466 = vpack.c.b16 %v454, %v453
      %v467 = vpack.c.b16 %v456, %v455
      %v468 = vpack.c.b16 %v458, %v457
      %v469 = vpack.c.b16 %v460, %v459
      %v470 = vpack.c.b16 %v462, %v461
      %479 = vmatprep.subr.bf16.mxu0 0
      %480 = vmatpush1.bf16.msra.mxu0 %v470
      %481 = vmatprep.subr.bf16.mxu0 0
      %482 = vmatpush1.bf16.msra.mxu0 %v469
      %483 = vmatprep.subr.bf16.mxu0 0
      %484 = vmatpush1.bf16.msra.mxu0 %v468
      %485 = vmatprep.subr.bf16.mxu0 0
      %486 = vmatpush1.bf16.msra.mxu0 %v467
      %487 = vmatprep.subr.bf16.mxu0 0
      %488 = vmatpush1.bf16.msra.mxu0 %v466
      %489 = vmatprep.subr.bf16.mxu0 0
      %490 = vmatpush1.bf16.msra.mxu0 %v465
      %491 = vmatprep.subr.bf16.mxu0 0
      %492 = vmatpush1.bf16.msra.mxu0 %v464
      %493 = vmatprep.subr.bf16.mxu0 0
      %494 = vmatpush1.bf16.msra.mxu0 %v463
      %495 = vmatprep.subr.bf16.mxu0 0
      %496 = vmatpush2.bf16.msra.mxu0 0
      %497 = vmatprep.subr.bf16.mxu0 0
      %498 = vmatpush2.bf16.msra.mxu0 0
      %499 = vmatprep.subr.bf16.mxu0 0
      %500 = vmatpush2.bf16.msra.mxu0 0
      %501 = vmatprep.subr.bf16.mxu0 0
      %502 = vmatpush2.bf16.msra.mxu0 0
      %503 = vmatprep.subr.bf16.mxu0 0
      %504 = vmatpush2.bf16.msra.mxu0 0
      %505 = vmatprep.subr.bf16.mxu0 0
      %506 = vmatpush2.bf16.msra.mxu0 0
      %507 = vmatprep.subr.bf16.mxu0 0
      %508 = vmatpush2.bf16.msra.mxu0 0
      %509 = vmatprep.subr.bf16.mxu0 0
      %510 = vmatpush2.bf16.msra.mxu0 0
      %511 = vmatprep.mubr.bf16.mxu0 0
      %512 = vmatmul.mubr.bf16.gmra.mxu0 %v399
      %v513 = vpop.f32.mrf.mxu0
      %v514 = vadd.f32 0.0, %v513
      %v515 = vpop.f32.mrf.mxu0
      %v516 = vpop.f32.mrf.mxu0
      %v517 = vadd.f32 0.0, %v516
      %v518 = vpop.f32.mrf.mxu0
      %519 = vmatprep.mubr.bf16.mxu0 0
      %520 = vmatmul.mubr.bf16.gmra.mxu0 %v400
      %v521 = vpop.f32.mrf.mxu0
      %v522 = vadd.f32 0.0, %v521
      %v523 = vpop.f32.mrf.mxu0
      %v524 = vpop.f32.mrf.mxu0
      %v525 = vadd.f32 0.0, %v524
      %v526 = vpop.f32.mrf.mxu0
      %527 = vmatprep.mubr.bf16.mxu0 0
      %528 = vmatmul.mubr.bf16.gmra.mxu0 %v401
      %v529 = vpop.f32.mrf.mxu0
      %v530 = vadd.f32 0.0, %v529
      %v531 = vpop.f32.mrf.mxu0
      %v532 = vpop.f32.mrf.mxu0
      %v533 = vadd.f32 0.0, %v532
      %v534 = vpop.f32.mrf.mxu0
      %535 = vmatprep.mubr.bf16.mxu0 0
      %536 = vmatmul.mubr.bf16.gmra.mxu0 %v402
      %v537 = vpop.f32.mrf.mxu0
      %v538 = vadd.f32 0.0, %v537
      %v539 = vpop.f32.mrf.mxu0
      %v540 = vpop.f32.mrf.mxu0
      %v541 = vadd.f32 0.0, %v540
      %v542 = vpop.f32.mrf.mxu0
      %543 = vmatprep.mubr.bf16.mxu0 0
      %544 = vmatmul.mubr.bf16.gmra.mxu0 %v403
      %v545 = vpop.f32.mrf.mxu0
      %v546 = vadd.f32 0.0, %v545
      %v547 = vpop.f32.mrf.mxu0
      %v548 = vpop.f32.mrf.mxu0
      %v549 = vadd.f32 0.0, %v548
      %v550 = vpop.f32.mrf.mxu0
      %551 = vmatprep.mubr.bf16.mxu0 0
      %552 = vmatmul.mubr.bf16.gmra.mxu0 %v404
      %v553 = vpop.f32.mrf.mxu0
      %v554 = vadd.f32 0.0, %v553
      %v555 = vpop.f32.mrf.mxu0
      %v556 = vpop.f32.mrf.mxu0
      %v557 = vadd.f32 0.0, %v556
      %v558 = vpop.f32.mrf.mxu0
      %559 = vmatprep.mubr.bf16.mxu0 0
      %560 = vmatmul.mubr.bf16.gmra.mxu0 %v405
      %v561 = vpop.f32.mrf.mxu0
      %v562 = vadd.f32 0.0, %v561
      %v563 = vpop.f32.mrf.mxu0
      %v564 = vpop.f32.mrf.mxu0
      %v565 = vadd.f32 0.0, %v564
      %v566 = vpop.f32.mrf.mxu0
      %567 = vmatprep.mubr.bf16.mxu0 0
      %568 = vmatmul.mubr.bf16.gmra.mxu0 %v406
      %v569 = vpop.f32.mrf.mxu0
      %v570 = vadd.f32 0.0, %v569
      %v571 = vpop.f32.mrf.mxu0
      %v572 = vpop.f32.mrf.mxu0
      %v573 = vadd.f32 0.0, %v572
      %v574 = vpop.f32.mrf.mxu0
      %575 = vmatprep.mubr.bf16.mxu0 0
      %576 = vmatmul.mubr.bf16.gmra.mxu0 %v407
      %v577 = vpop.f32.mrf.mxu0
      %v578 = vadd.f32 0.0, %v577
      %v579 = vpop.f32.mrf.mxu0
      %v580 = vpop.f32.mrf.mxu0
      %v581 = vadd.f32 0.0, %v580
      %v582 = vpop.f32.mrf.mxu0
      %583 = vmatprep.mubr.bf16.mxu0 0
      %584 = vmatmul.mubr.bf16.gmra.mxu0 %v408
      %v585 = vpop.f32.mrf.mxu0
      %v586 = vadd.f32 0.0, %v585
      %v587 = vpop.f32.mrf.mxu0
      %v588 = vpop.f32.mrf.mxu0
      %v589 = vadd.f32 0.0, %v588
      %v590 = vpop.f32.mrf.mxu0
      %591 = vmatprep.mubr.bf16.mxu0 0
      %592 = vmatmul.mubr.bf16.gmra.mxu0 %v409
      %v593 = vpop.f32.mrf.mxu0
      %v594 = vadd.f32 0.0, %v593
      %v595 = vpop.f32.mrf.mxu0
      %v596 = vpop.f32.mrf.mxu0
      %v597 = vadd.f32 0.0, %v596
      %v598 = vpop.f32.mrf.mxu0
      %599 = vmatprep.mubr.bf16.mxu0 0
      %600 = vmatmul.mubr.bf16.gmra.mxu0 %v410
      %v601 = vpop.f32.mrf.mxu0
      %v602 = vadd.f32 0.0, %v601
      %v603 = vpop.f32.mrf.mxu0
      %v604 = vpop.f32.mrf.mxu0
      %v605 = vadd.f32 0.0, %v604
      %v606 = vpop.f32.mrf.mxu0
      %607 = vmatprep.mubr.bf16.mxu0 0
      %608 = vmatmul.mubr.bf16.gmra.mxu0 %v411
      %v609 = vpop.f32.mrf.mxu0
      %v610 = vadd.f32 0.0, %v609
      %v611 = vpop.f32.mrf.mxu0
      %v612 = vpop.f32.mrf.mxu0
      %v613 = vadd.f32 0.0, %v612
      %v614 = vpop.f32.mrf.mxu0
      %615 = vmatprep.mubr.bf16.mxu0 0
      %616 = vmatmul.mubr.bf16.gmra.mxu0 %v412
      %v617 = vpop.f32.mrf.mxu0
      %v618 = vadd.f32 0.0, %v617
      %v619 = vpop.f32.mrf.mxu0
      %v620 = vpop.f32.mrf.mxu0
      %v621 = vadd.f32 0.0, %v620
      %v622 = vpop.f32.mrf.mxu0
      %623 = vmatprep.mubr.bf16.mxu0 0
      %624 = vmatmul.mubr.bf16.gmra.mxu0 %v413
      %v625 = vpop.f32.mrf.mxu0
      %v626 = vadd.f32 0.0, %v625
      %v627 = vpop.f32.mrf.mxu0
      %v628 = vpop.f32.mrf.mxu0
      %v629 = vadd.f32 0.0, %v628
      %v630 = vpop.f32.mrf.mxu0
      %631 = vmatprep.mubr.bf16.mxu0 0
      %632 = vmatmul.mubr.bf16.gmra.mxu0 %v414
      %v633 = vpop.f32.mrf.mxu0
      %v634 = vadd.f32 0.0, %v633
      %v635 = vpop.f32.mrf.mxu0
      %v636 = vpop.f32.mrf.mxu0
      %v637 = vadd.f32 0.0, %v636
      %v638 = vpop.f32.mrf.mxu0
      %639 = vdwg.mxu0
      %v640 = vadd.f32 %v255, %v514
      %v641 = vadd.f32 %v256, %v517
      %v642 = vadd.f32 %v257, %v522
      %v643 = vadd.f32 %v258, %v525
      %v644 = vadd.f32 %v259, %v530
      %v645 = vadd.f32 %v260, %v533
      %v646 = vadd.f32 %v261, %v538
      %v647 = vadd.f32 %v262, %v541
      %v648 = vadd.f32 %v263, %v546
      %v649 = vadd.f32 %v264, %v549
      %v650 = vadd.f32 %v265, %v554
      %v651 = vadd.f32 %v266, %v557
      %v652 = vadd.f32 %v267, %v562
      %v653 = vadd.f32 %v268, %v565
      %v654 = vadd.f32 %v269, %v570
      %v655 = vadd.f32 %v270, %v573
      %v656 = vadd.f32 %v271, %v578
      %v657 = vadd.f32 %v272, %v581
      %v658 = vadd.f32 %v273, %v586
      %v659 = vadd.f32 %v274, %v589
      %v660 = vadd.f32 %v275, %v594
      %v661 = vadd.f32 %v276, %v597
      %v662 = vadd.f32 %v277, %v602
      %v663 = vadd.f32 %v278, %v605
      %v664 = vadd.f32 %v279, %v610
      %v665 = vadd.f32 %v280, %v613
      %v666 = vadd.f32 %v281, %v618
      %v667 = vadd.f32 %v282, %v621
      %v668 = vadd.f32 %v283, %v626
      %v669 = vadd.f32 %v284, %v629
      %v670 = vadd.f32 %v285, %v634
      %v671 = vadd.f32 %v286, %v637
      %672 = vst [vmem:[#allocation2] sm:$0xff] %v640
      %673 = vst [vmem:[#allocation2 + $0x8] sm:$0xff] %v641
      %674 = vst [vmem:[#allocation2 + $0x10] sm:$0xff] %v642
      %675 = vst [vmem:[#allocation2 + $0x18] sm:$0xff] %v643
      %676 = vst [vmem:[#allocation2 + $0x20] sm:$0xff] %v644
      %677 = vst [vmem:[#allocation2 + $0x28] sm:$0xff] %v645
      %678 = vst [vmem:[#allocation2 + $0x30] sm:$0xff] %v646
      %679 = vst [vmem:[#allocation2 + $0x38] sm:$0xff] %v647
      %680 = vst [vmem:[#allocation2 + $0x40] sm:$0xff] %v648
      %681 = vst [vmem:[#allocation2 + $0x48] sm:$0xff] %v649
      %682 = vst [vmem:[#allocation2 + $0x50] sm:$0xff] %v650
      %683 = vst [vmem:[#allocation2 + $0x58] sm:$0xff] %v651
      %684 = vst [vmem:[#allocation2 + $0x60] sm:$0xff] %v652
      %685 = vst [vmem:[#allocation2 + $0x68] sm:$0xff] %v653
      %686 = vst [vmem:[#allocation2 + $0x70] sm:$0xff] %v654
      %687 = vst [vmem:[#allocation2 + $0x78] sm:$0xff] %v655
      %688 = vst [vmem:[#allocation2 + $0x80] sm:$0xff] %v656
      %689 = vst [vmem:[#allocation2 + $0x88] sm:$0xff] %v657
      %690 = vst [vmem:[#allocation2 + $0x90] sm:$0xff] %v658
      %691 = vst [vmem:[#allocation2 + $0x98] sm:$0xff] %v659
      %692 = vst [vmem:[#allocation2 + $0xa0] sm:$0xff] %v660
      %693 = vst [vmem:[#allocation2 + $0xa8] sm:$0xff] %v661
      %694 = vst [vmem:[#allocation2 + $0xb0] sm:$0xff] %v662
      %695 = vst [vmem:[#allocation2 + $0xb8] sm:$0xff] %v663
      %696 = vst [vmem:[#allocation2 + $0xc0] sm:$0xff] %v664
      %697 = vst [vmem:[#allocation2 + $0xc8] sm:$0xff] %v665
      %698 = vst [vmem:[#allocation2 + $0xd0] sm:$0xff] %v666
      %699 = vst [vmem:[#allocation2 + $0xd8] sm:$0xff] %v667
      %700 = vst [vmem:[#allocation2 + $0xe0] sm:$0xff] %v668
      %701 = vst [vmem:[#allocation2 + $0xe8] sm:$0xff] %v669
      %702 = vst [vmem:[#allocation2 + $0xf0] sm:$0xff] %v670
      %703 = vst [vmem:[#allocation2 + $0xf8] sm:$0xff] %v671
      // Predicated region
      $region33: #{matmul_fused.1} parent=27 // pred_check
        %p704 = pneg %p219
      $region34: #{matmul_fused.1} parent=27 // pred_check_branch
        %706 = sbr.rel (%p704) target = $region36
      $region35: #{matmul_fused.1} parent=27 // pred_region
        %v707 = vld [vmem:[#allocation2] sm:$0xff]
        %v708 = vld [vmem:[#allocation2 + $0x8] sm:$0xff]
        %v709 = vld [vmem:[#allocation2 + $0x10] sm:$0xff]
        %v710 = vld [vmem:[#allocation2 + $0x18] sm:$0xff]
        %v711 = vld [vmem:[#allocation2 + $0x20] sm:$0xff]
        %v712 = vld [vmem:[#allocation2 + $0x28] sm:$0xff]
        %v713 = vld [vmem:[#allocation2 + $0x30] sm:$0xff]
        %v714 = vld [vmem:[#allocation2 + $0x38] sm:$0xff]
        %v715 = vld [vmem:[#allocation2 + $0x40] sm:$0xff]
        %v716 = vld [vmem:[#allocation2 + $0x48] sm:$0xff]
        %v717 = vld [vmem:[#allocation2 + $0x50] sm:$0xff]
        %v718 = vld [vmem:[#allocation2 + $0x58] sm:$0xff]
        %v719 = vld [vmem:[#allocation2 + $0x60] sm:$0xff]
        %v720 = vld [vmem:[#allocation2 + $0x68] sm:$0xff]
        %v721 = vld [vmem:[#allocation2 + $0x70] sm:$0xff]
        %v722 = vld [vmem:[#allocation2 + $0x78] sm:$0xff]
        %v723 = vld [vmem:[#allocation2 + $0x80] sm:$0xff]
        %v724 = vld [vmem:[#allocation2 + $0x88] sm:$0xff]
        %v725 = vld [vmem:[#allocation2 + $0x90] sm:$0xff]
        %v726 = vld [vmem:[#allocation2 + $0x98] sm:$0xff]
        %v727 = vld [vmem:[#allocation2 + $0xa0] sm:$0xff]
        %v728 = vld [vmem:[#allocation2 + $0xa8] sm:$0xff]
        %v729 = vld [vmem:[#allocation2 + $0xb0] sm:$0xff]
        %v730 = vld [vmem:[#allocation2 + $0xb8] sm:$0xff]
        %v731 = vld [vmem:[#allocation2 + $0xc0] sm:$0xff]
        %v732 = vld [vmem:[#allocation2 + $0xc8] sm:$0xff]
        %v733 = vld [vmem:[#allocation2 + $0xd0] sm:$0xff]
        %v734 = vld [vmem:[#allocation2 + $0xd8] sm:$0xff]
        %v735 = vld [vmem:[#allocation2 + $0xe0] sm:$0xff]
        %v736 = vld [vmem:[#allocation2 + $0xe8] sm:$0xff]
        %v737 = vld [vmem:[#allocation2 + $0xf0] sm:$0xff]
        %v738 = vld [vmem:[#allocation2 + $0xf8] sm:$0xff]
        %v739 = vmax.f32 %v707, 0.0
        %v740 = vmax.f32 %v708, 0.0
        %v741 = vmax.f32 %v709, 0.0
        %v742 = vmax.f32 %v710, 0.0
        %v743 = vmax.f32 %v711, 0.0
        %v744 = vmax.f32 %v712, 0.0
        %v745 = vmax.f32 %v713, 0.0
        %v746 = vmax.f32 %v714, 0.0
        %v747 = vmax.f32 %v715, 0.0
        %v748 = vmax.f32 %v716, 0.0
        %v749 = vmax.f32 %v717, 0.0
        %v750 = vmax.f32 %v718, 0.0
        %v751 = vmax.f32 %v719, 0.0
        %v752 = vmax.f32 %v720, 0.0
        %v753 = vmax.f32 %v721, 0.0
        %v754 = vmax.f32 %v722, 0.0
        %v755 = vmax.f32 %v723, 0.0
        %v756 = vmax.f32 %v724, 0.0
        %v757 = vmax.f32 %v725, 0.0
        %v758 = vmax.f32 %v726, 0.0
        %v759 = vmax.f32 %v727, 0.0
        %v760 = vmax.f32 %v728, 0.0
        %v761 = vmax.f32 %v729, 0.0
        %v762 = vmax.f32 %v730, 0.0
        %v763 = vmax.f32 %v731, 0.0
        %v764 = vmax.f32 %v732, 0.0
        %v765 = vmax.f32 %v733, 0.0
        %v766 = vmax.f32 %v734, 0.0
        %v767 = vmax.f32 %v735, 0.0
        %v768 = vmax.f32 %v736, 0.0
        %v769 = vmax.f32 %v737, 0.0
        %v770 = vmax.f32 %v738, 0.0
        %771 = vst [vmem:[%s216] sm:$0xff] %v739
        %772 = vst [vmem:[%s216 + $0x8] sm:$0xff] %v740
        %773 = vst [vmem:[%s216 + $0x10] sm:$0xff] %v741
        %774 = vst [vmem:[%s216 + $0x18] sm:$0xff] %v742
        %775 = vst [vmem:[%s216 + $0x20] sm:$0xff] %v743
        %776 = vst [vmem:[%s216 + $0x28] sm:$0xff] %v744
        %777 = vst [vmem:[%s216 + $0x30] sm:$0xff] %v745
        %778 = vst [vmem:[%s216 + $0x38] sm:$0xff] %v746
        %779 = vst [vmem:[%s216 + $0x40] sm:$0xff] %v747
        %780 = vst [vmem:[%s216 + $0x48] sm:$0xff] %v748
        %781 = vst [vmem:[%s216 + $0x50] sm:$0xff] %v749
        %782 = vst [vmem:[%s216 + $0x58] sm:$0xff] %v750
        %783 = vst [vmem:[%s216 + $0x60] sm:$0xff] %v751
        %784 = vst [vmem:[%s216 + $0x68] sm:$0xff] %v752
        %785 = vst [vmem:[%s216 + $0x70] sm:$0xff] %v753
        %786 = vst [vmem:[%s216 + $0x78] sm:$0xff] %v754
        %787 = vst [vmem:[%s216 + $0x80] sm:$0xff] %v755
        %788 = vst [vmem:[%s216 + $0x88] sm:$0xff] %v756
        %789 = vst [vmem:[%s216 + $0x90] sm:$0xff] %v757
        %790 = vst [vmem:[%s216 + $0x98] sm:$0xff] %v758
        %791 = vst [vmem:[%s216 + $0xa0] sm:$0xff] %v759
        %792 = vst [vmem:[%s216 + $0xa8] sm:$0xff] %v760
        %793 = vst [vmem:[%s216 + $0xb0] sm:$0xff] %v761
        %794 = vst [vmem:[%s216 + $0xb8] sm:$0xff] %v762
        %795 = vst [vmem:[%s216 + $0xc0] sm:$0xff] %v763
        %796 = vst [vmem:[%s216 + $0xc8] sm:$0xff] %v764
        %797 = vst [vmem:[%s216 + $0xd0] sm:$0xff] %v765
        %798 = vst [vmem:[%s216 + $0xd8] sm:$0xff] %v766
        %799 = vst [vmem:[%s216 + $0xe0] sm:$0xff] %v767
        %800 = vst [vmem:[%s216 + $0xe8] sm:$0xff] %v768
        %801 = vst [vmem:[%s216 + $0xf0] sm:$0xff] %v769
        %802 = vst [vmem:[%s216 + $0xf8] sm:$0xff] %v770
      $region36: #{matmul_fused.1} parent=27 // pred_fallthru
        _
      %s803 = smul.u32 32, %s18
      %p804 = scmp.lt.s32.totalorder %s803, 63
      %s805 = scalar_select %p804, %s803, 63
      %p806 = scmp.lt.s32.totalorder %s19, 0
      %s807 = scalar_select %p806, %s19, 0
      %s808 = sadd.s32 %s807, %s805
      %s809 = smul.addr %s808, 8
      %s810 = scalar_lea.vmem %s2, %s809
      // Predicated region
      $region37: #{matmul_fused.1} parent=27 // pred_check
        %p811 = pneg %p108
      $region38: #{matmul_fused.1} parent=27 // pred_check_branch
        %813 = sbr.rel (%p811) target = $region40
      $region39: #{matmul_fused.1} parent=27 // pred_region
        %s814 = smul.u32 32, %s18
      $region40: #{matmul_fused.1} parent=27 // pred_fallthru
        _
    $region28: #{matmul_fused.1} parent=5 // pred_fallthru
      _
    %p815 = scmp.le.s32.totalorder 2, %s8
    // Predicated region
    $region41: #{matmul_fused.1} parent=5 // pred_check
      %p816 = pneg %p815
    $region42: #{matmul_fused.1} parent=5 // pred_check_branch
      %818 = sbr.rel (%p816) target = $region44
    $region43: #{matmul_fused.1} parent=5 // pred_region
      %s819 = ssub.s32 %s8, 2
      // Predicated region
      $region45: #{matmul_fused.1} parent=43 // pred_check
        %p820 = pneg %p114
      $region46: #{matmul_fused.1} parent=43 // pred_check_branch
        %822 = sbr.rel (%p820) target = $region48
      $region47: #{matmul_fused.1} parent=43 // pred_region
        %s823 = smul.u32 32, %s21
        %p824 = scmp.lt.s32.totalorder %s823, 63
        %s825 = scalar_select %p824, %s823, 63
        %p826 = scmp.lt.s32.totalorder %s22, 0
        %s827 = scalar_select %p826, %s22, 0
        %s828 = sadd.s32 %s827, %s825
        %s829 = smul.addr %s828, 8
        %s830 = scalar_lea.vmem %s2, %s829
      $region48: #{matmul_fused.1} parent=43 // pred_fallthru
        _
    $region44: #{matmul_fused.1} parent=5 // pred_fallthru
      _
  $region6: #{matmul_fused.1} parent=0 // loop_footer
    %s12 = sadd.s32 1, %s8
  $region7: #{matmul_fused.1} parent=0 // loop_footer_branch
    %7 = sbr.rel target = $region3
  $region8: #{matmul_fused.1} parent=0 // loop_exit
    _

</llo_original>
